<compile_context>
chip_gen: v6e
topology: v6e:2x2x1
jax: 0.10.0
libtpu: 0.0.40
codegen_flags: <defaults>
</compile_context>

<pallas_src>
import jax
import jax.numpy as jnp
from jax import lax
from jax.experimental import pallas as pl
from jax.experimental.pallas import tpu as pltpu


# -----------------------------------------------------------------------------
# Pallas kernel: fused pos+neg batched valid cross-correlation against a shared
# per-sample anchor kernel.  Inputs arrive pre-im2col'd:
#   patches_ref : (B, K, 2P)  K = C*kh*kw on sublanes, 2P = pos|neg windows
#   anch_ref    : (B, K, 1)   flattened per-sample anchor kernel
# Output: (B, 2P) flat fused response maps, split/reshaped to (B,1,ho,wo) in
# the wrapper.   out[b, p] = sum_k patches[b, k, p] * anchor[b, k]
# -----------------------------------------------------------------------------
def _xcorr_fused_kernel(patches_ref, anch_ref, out_ref):
    patches = patches_ref[...].astype(jnp.float32)          # (B, K, 2P)
    anch = anch_ref[...].astype(jnp.float32)                 # (B, K, 1)
    # NOT a dot/einsum on purpose: K=32, P=9 cannot amortize MXU fill/drain;
    # the VPU multiply + XLU sublane-reduce is the right path at this size.
    out_ref[...] = jnp.sum(patches * anch, axis=1).astype(out_ref.dtype)  # (B, 2P)


def cross_correlation_pair(pos_feat, neg_feat, anchor):
    """Fused Pallas valid cross-correlation of two feature maps vs. one anchor.

    pos_feat, neg_feat: (B, C, H, W); anchor: (B, C, kh, kw).
    Returns (cxp, cxn), each (B, 1, H - kh + 1, W - kw + 1) -- identical to
    running the PyTorch per-sample conv2d loop on each feature map.
    """
    B, C, H, W = pos_feat.shape
    _, _, kh, kw = anchor.shape
    ho, wo = H - kh + 1, W - kw + 1
    P = ho * wo
    K = C * kh * kw

    def patches_of(feat):
        # Single HLO im2col: output channels are ordered channel-major
        # (c, dy, dx), matching anchor.reshape(B, C*kh*kw).
        p = lax.conv_general_dilated_patches(
            feat, (kh, kw), (1, 1), "VALID",
            dimension_numbers=("NCHW", "OIHW", "NCHW"))       # (B, K, ho, wo)
        return p.reshape(B, K, P)

    # Fuse pos/neg into one operand: one DMA stream in, one store stream out.
    patches = jnp.concatenate([patches_of(pos_feat), patches_of(neg_feat)],
                              axis=-1)                         # (B, K, 2P)
    anch_flat = anchor.reshape(B, K, 1)                        # (B, K, 1)

    # No grid -> no pipeline scaffolding; whole (tiny) arrays live in VMEM.
    out_flat = pl.pallas_call(
        _xcorr_fused_kernel,
        out_shape=jax.ShapeDtypeStruct((B, 2 * P), pos_feat.dtype),
        in_specs=[
            pl.BlockSpec(memory_space=pltpu.MemorySpace.VMEM),
            pl.BlockSpec(memory_space=pltpu.MemorySpace.VMEM),
        ],
        out_specs=pl.BlockSpec(memory_space=pltpu.MemorySpace.VMEM),
    )(patches, anch_flat)                                      # (B, 2P)

    cxp = out_flat[:, :P].reshape(B, 1, ho, wo)
    cxn = out_flat[:, P:].reshape(B, 1, ho, wo)
    return cxp, cxn


# -----------------------------------------------------------------------------
# Synthetic VAE (encoder/decoder) in plain JAX -- glue around the Pallas kernel.
# TODO(synk): the real pytlib VAE definition is not included in the module
# source; this is a deterministic synthetic stand-in with the same interface
# (encoder feature maps, recon/mu/logvar, get_encoding_feature_map).
# -----------------------------------------------------------------------------
FEAT_C = 8          # encoder output channels
LATENT = 16
CROP_HW = 8         # pos_crop spatial size
FRAME_HW = 16       # pos / neg spatial size


def init_vae_params(key):
    ks = jax.random.split(key, 8)
    flat_enc = FEAT_C * (CROP_HW // 4) * (CROP_HW // 4)   # encoder on crop -> C*2*2
    flat_dec = 3 * CROP_HW * CROP_HW
    p = {
        "conv1_w": 0.1 * jax.random.normal(ks[0], (FEAT_C, 3, 3, 3), jnp.float32),
        "conv1_b": jnp.zeros((FEAT_C,), jnp.float32),
        "conv2_w": 0.1 * jax.random.normal(ks[1], (FEAT_C, FEAT_C, 3, 3), jnp.float32),
        "conv2_b": jnp.zeros((FEAT_C,), jnp.float32),
        "fc_mu_w": 0.1 * jax.random.normal(ks[2], (flat_enc, LATENT), jnp.float32),
        "fc_mu_b": jnp.zeros((LATENT,), jnp.float32),
        "fc_lv_w": 0.1 * jax.random.normal(ks[3], (flat_enc, LATENT), jnp.float32),
        "fc_lv_b": jnp.zeros((LATENT,), jnp.float32),
        "dec_w": 0.1 * jax.random.normal(ks[4], (LATENT, flat_dec), jnp.float32),
        "dec_b": jnp.zeros((flat_dec,), jnp.float32),
    }
    return p


def _conv2d_nchw(x, w, b, stride, padding):
    out = lax.conv_general_dilated(
        x, w, window_strides=(stride, stride),
        padding=[(padding, padding), (padding, padding)],
        dimension_numbers=("NCHW", "OIHW", "NCHW"))
    return out + b[None, :, None, None]


def encoder_forward(params, x):
    """Two strided convs + ReLU.  (B,3,S,S) -> (B, FEAT_C, S//4, S//4)."""
    h = jax.nn.relu(_conv2d_nchw(x, params["conv1_w"], params["conv1_b"], 2, 1))
    h = jax.nn.relu(_conv2d_nchw(h, params["conv2_w"], params["conv2_b"], 2, 1))
    return h


def vae_forward(params, x, eps_key):
    """Returns (recon, mu, logvar, encoding_feature_map)."""
    feat = encoder_forward(params, x)                       # (B, C, 2, 2)
    B = feat.shape[0]
    flat = feat.reshape(B, -1)
    mu = flat @ params["fc_mu_w"] + params["fc_mu_b"]
    logvar = flat @ params["fc_lv_w"] + params["fc_lv_b"]
    eps = jax.random.normal(eps_key, mu.shape, mu.dtype)    # deterministic eps
    z = mu + jnp.exp(0.5 * logvar) * eps
    recon = jax.nn.sigmoid(z @ params["dec_w"] + params["dec_b"])
    recon = recon.reshape(B, 3, CROP_HW, CROP_HW)
    return recon, mu, logvar, feat


# -----------------------------------------------------------------------------
# TripletCorrelationalDetector.forward
# -----------------------------------------------------------------------------
def triplet_correlational_detector_forward(params, pos, neg, pos_crop, eps_key):
    pos_feature_map = encoder_forward(params, pos)          # (B, C, 4, 4)
    neg_feature_map = encoder_forward(params, neg)          # (B, C, 4, 4)
    recon, mu, logvar, anchor_feature_map = vae_forward(params, pos_crop, eps_key)
    # (The PyTorch module also stashes anchor_feature_map[0] as a Parameter;
    #  that side effect does not affect the returned values.)
    cxp, cxn = cross_correlation_pair(
        pos_feature_map, neg_feature_map, anchor_feature_map)   # (B,1,3,3) each
    return (pos_crop, cxp, cxn, recon, mu, logvar)


# -----------------------------------------------------------------------------
# Reference (pure JAX) per-sample cross-correlation, for a correctness check.
# -----------------------------------------------------------------------------
def cross_correlation_ref(x1, x2):
    B = x1.shape[0]
    outs = []
    for i in range(B):
        r = lax.conv_general_dilated(
            x1[i:i + 1], x2[i:i + 1], (1, 1), "VALID",
            dimension_numbers=("NCHW", "OIHW", "NCHW"))
        outs.append(r[0])
    return jnp.stack(outs, 0)


if __name__ == "__main__":
    B = 2
    key = jax.random.PRNGKey(0)
    k_pos, k_neg, k_crop, k_eps = jax.random.split(key, 4)
    params = init_vae_params(jax.random.PRNGKey(1))

    pos = jax.random.normal(k_pos, (B, 3, FRAME_HW, FRAME_HW), jnp.float32)
    neg = jax.random.normal(k_neg, (B, 3, FRAME_HW, FRAME_HW), jnp.float32)
    pos_crop = jax.random.normal(k_crop, (B, 3, CROP_HW, CROP_HW), jnp.float32)

    out = triplet_correlational_detector_forward(params, pos, neg, pos_crop, k_eps)
    out = jax.block_until_ready(out)
    pc, cxp, cxn, recon, mu, logvar = out

    # sanity: shapes
    assert pc.shape == (B, 3, CROP_HW, CROP_HW)
    assert cxp.shape == (B, 1, 3, 3) and cxn.shape == (B, 1, 3, 3)
    assert recon.shape == (B, 3, CROP_HW, CROP_HW)
    assert mu.shape == (B, LATENT) and logvar.shape == (B, LATENT)

    # correctness of the fused Pallas cross-correlation vs. per-sample conv2d ref
    pos_fm = encoder_forward(params, pos)
    neg_fm = encoder_forward(params, neg)
    anchor_fm = encoder_forward(params, pos_crop)
    ref_p = cross_correlation_ref(pos_fm, anchor_fm)
    ref_n = cross_correlation_ref(neg_fm, anchor_fm)
    assert jnp.allclose(cxp, ref_p, rtol=1e-4, atol=1e-4), "cxp mismatch"
    assert jnp.allclose(cxn, ref_n, rtol=1e-4, atol=1e-4), "cxn mismatch"

    print("KERNEL_OK")
</pallas_src>

<mosaic_0001>
module attributes {stable_mosaic.version = 11 : i64} {
  func.func @_xcorr_fused_kernel(%arg0: memref<2x32x18xf32, #tpu.memory_space<vmem>>, %arg1: memref<2x32x1xf32, #tpu.memory_space<vmem>>, %arg2: memref<2x18xf32, #tpu.memory_space<vmem>>) attributes {dimension_semantics = [], scalar_prefetch = 0 : i64, scratch_operands = 0 : i64, tpu.core_type = #tpu.core_type<tc>} {
    %c0 = arith.constant 0 : index
    %c0_0 = arith.constant 0 : index
    %c0_1 = arith.constant 0 : index
    %0 = vector.load %arg0[%c0, %c0_0, %c0_1] : memref<2x32x18xf32, #tpu.memory_space<vmem>>, vector<2x32x18xf32>
    %c0_2 = arith.constant 0 : index
    %c0_3 = arith.constant 0 : index
    %c0_4 = arith.constant 0 : index
    %1 = vector.load %arg1[%c0_2, %c0_3, %c0_4] : memref<2x32x1xf32, #tpu.memory_space<vmem>>, vector<2x32x1xf32>
    %2 = vector.broadcast %1 : vector<2x32x1xf32> to vector<2x32x18xf32>
    %3 = arith.mulf %0, %2 : vector<2x32x18xf32>
    %cst = arith.constant dense<0.000000e+00> : vector<2x18xf32>
    %4 = vector.multi_reduction <add>, %3, %cst [1] : vector<2x32x18xf32> to vector<2x18xf32>
    %c0_5 = arith.constant 0 : index
    %c0_6 = arith.constant 0 : index
    %5 = vector.load %arg2[%c0_5, %c0_6] : memref<2x18xf32, #tpu.memory_space<vmem>>, vector<2x18xf32>
    tpu.vector_store %arg2[%c0_5, %c0_6], %4 {strides = array<i32>} : memref<2x18xf32, #tpu.memory_space<vmem>>, vector<2x18xf32>,
    return
  }
}

</mosaic_0001>

<llo_original>
// kernel: tpu_custom_call.1
$region0: #{tpu_custom_call.1}
  #allocation0 [shape = 'u32[]', space=smem, size = 0x4, offset = 0x4, fixed_abs, tag = 'smem constant byte address 0x4 - core index']
  #allocation1 [shape = 'u32[144,128]{1,0:T(1,128)}', space=vmem, size = 0x12000, scoped, tag = 'internal scratch']
  %s0 = inlined_call_operand.vmem [shape: f32[2,32,18], index: 0, kind: input, shape index: {}]
  %s1 = inlined_call_operand.vmem [shape: f32[2,32,1], index: 1, kind: input, shape index: {}]
  %s2 = inlined_call_operand.hbm [shape: f32[2,18], index: 2, kind: output, shape index: {}]
  %s3 = sld [smem:[#allocation0]]
  $region18: #{tpu_custom_call.1} parent=0
    _
  %s5 = ssub.s32 1, %s3
  %s6 = scalar_select 0, %s5, %s3
  $region1: #{tpu_custom_call.1} parent=0
    #allocation2 [shape = 'u8[1024]{0}', space=vmem, size = 0x400, scoped, tag = 'output window, operand 0, single buffered']
    #allocation3 [shape = 's32[1]{0}', space=sflag, size = 0x4, scoped, tag = 'scoped memory for tpu_custom_call.1']
    %7 = vsyncpa [#allocation3], 0
    // Predicated region
    $region2: #{tpu_custom_call.1} parent=1 // pred_check
      _
    $region3: #{tpu_custom_call.1} parent=1 // pred_check_branch
      %9 = sbr.rel (0) target = $region5
    $region4: #{tpu_custom_call.1} parent=1 // pred_region
      _
    $region5: #{tpu_custom_call.1} parent=1 // pred_fallthru
      _
    // Predicated region
    $region6: #{tpu_custom_call.1} parent=1 // pred_check
      _
    $region7: #{tpu_custom_call.1} parent=1 // pred_check_branch
      %11 = sbr.rel (0) target = $region9
    $region8: #{tpu_custom_call.1} parent=1 // pred_region
      _
    $region9: #{tpu_custom_call.1} parent=1 // pred_fallthru
      _
    %v12 = vld [vmem:[%s0] sm:$0xff]
    %v13 = vld [vmem:[%s0 + $0x8] sm:$0xff]
    %v14 = vld [vmem:[%s0 + $0x10] sm:$0xff]
    %v15 = vld [vmem:[%s0 + $0x18] sm:$0xff]
    %v16 = vld [vmem:[%s0 + $0x20] sm:$0xff]
    %v17 = vld [vmem:[%s0 + $0x28] sm:$0xff]
    %v18 = vld [vmem:[%s0 + $0x30] sm:$0xff]
    %v19 = vld [vmem:[%s0 + $0x38] sm:$0xff]
    %v20 = vld [vmem:[%s1] sm:$0xff]
    %v21 = vld [vmem:[%s1 + $0x8] sm:$0xff]
    %v22 = vld [vmem:[%s1 + $0x10] sm:$0xff]
    %v23 = vld [vmem:[%s1 + $0x18] sm:$0xff]
    %v24 = vld [vmem:[%s1 + $0x20] sm:$0xff]
    %v25 = vld [vmem:[%s1 + $0x28] sm:$0xff]
    %v26 = vld [vmem:[%s1 + $0x30] sm:$0xff]
    %v27 = vld [vmem:[%s1 + $0x38] sm:$0xff]
    %29 = vset.pattern.permute.xlu0 0
    %30 = vperm.xlu0 %29, %v20
    %v31 = vpop.permute.xlu0 %30
    %34 = vset.pattern.permute.xlu0 0
    %35 = vperm.xlu0 %34, %v21
    %v36 = vpop.permute.xlu0 %35
    %39 = vset.pattern.permute.xlu0 0
    %40 = vperm.xlu0 %39, %v22
    %v41 = vpop.permute.xlu0 %40
    %44 = vset.pattern.permute.xlu0 0
    %45 = vperm.xlu0 %44, %v23
    %v46 = vpop.permute.xlu0 %45
    %49 = vset.pattern.permute.xlu0 0
    %50 = vperm.xlu0 %49, %v24
    %v51 = vpop.permute.xlu0 %50
    %54 = vset.pattern.permute.xlu0 0
    %55 = vperm.xlu0 %54, %v25
    %v56 = vpop.permute.xlu0 %55
    %59 = vset.pattern.permute.xlu0 0
    %60 = vperm.xlu0 %59, %v26
    %v61 = vpop.permute.xlu0 %60
    %64 = vset.pattern.permute.xlu0 0
    %65 = vperm.xlu0 %64, %v27
    %v66 = vpop.permute.xlu0 %65
    %v68 = vmul.f32 %v12, %v31
    %v69 = vmul.f32 %v13, %v36
    %v70 = vmul.f32 %v14, %v41
    %v71 = vmul.f32 %v15, %v46
    %v72 = vmul.f32 %v16, %v51
    %v73 = vmul.f32 %v17, %v56
    %v74 = vmul.f32 %v18, %v61
    %v75 = vmul.f32 %v19, %v66
    %vm76 = vcmask 146432
    %v77 = vsel %vm76, %v68, 0.0
    %v78 = vsel %vm76, %v69, 0.0
    %v79 = vadd.f32 %v77, %v78
    %v80 = vsel %vm76, %v70, 0.0
    %v81 = vadd.f32 %v79, %v80
    %v82 = vsel %vm76, %v71, 0.0
    %v83 = vadd.f32 %v81, %v82
    %v84 = vrot.slane %v83, 4
    %v85 = vadd.f32 %v83, %v84
    %v86 = vrot.slane %v85, 2
    %v87 = vadd.f32 %v85, %v86
    %v88 = vrot.slane %v87, 1
    %v89 = vadd.f32 %v87, %v88
    %v90 = vsel %vm76, %v72, 0.0
    %v91 = vsel %vm76, %v73, 0.0
    %v92 = vadd.f32 %v90, %v91
    %v93 = vsel %vm76, %v74, 0.0
    %v94 = vadd.f32 %v92, %v93
    %v95 = vsel %vm76, %v75, 0.0
    %v96 = vadd.f32 %v94, %v95
    %v97 = vrot.slane %v96, 4
    %v98 = vadd.f32 %v96, %v97
    %v99 = vrot.slane %v98, 2
    %v100 = vadd.f32 %v98, %v99
    %v101 = vrot.slane %v100, 1
    %v102 = vadd.f32 %v100, %v101
    %vm105 = vcmask 1041409
    %v106 = vsel %vm105, %v102, %v89
    %vm108 = vcmask 140288
    %109 = vst.msk [vmem:[#allocation2] sm:$0x3] %vm108, %v106
    // Predicated region
    $region10: #{tpu_custom_call.1} parent=1 // pred_check
      _
    $region11: #{tpu_custom_call.1} parent=1 // pred_check_branch
      %111 = sbr.rel (0) target = $region13
    $region12: #{tpu_custom_call.1} parent=1 // pred_region
      %s113 = ssub.s32 32, 32
      %114 = vsyncadd [#allocation3], %s113
      %s116 = sshll.u32 [#allocation2], 4
      %s117 = int_to_ptr.vmem [resolvable:$true] %s116
      %119 = dma.vmem_to_hbm [thread:$0]  %s117, 32, %s2, [#allocation3]
    $region13: #{tpu_custom_call.1} parent=1 // pred_fallthru
      _
    // Predicated region
    $region14: #{tpu_custom_call.1} parent=1 // pred_check
      _
    $region15: #{tpu_custom_call.1} parent=1 // pred_check_branch
      %121 = sbr.rel (0) target = $region17
    $region16: #{tpu_custom_call.1} parent=1 // pred_region
      %122 = dma.done [#allocation3], 32
    $region17: #{tpu_custom_call.1} parent=1 // pred_fallthru
      _
    %123 = vsyncpa [#allocation3], 1

</llo_original>
